<compile_context>
chip_gen: v7x
topology: tpu7x:2x2x1
jax: 0.10.0
libtpu: 0.0.40
codegen_flags: <defaults>
</compile_context>

<pallas_src>
import functools

import jax
import jax.numpy as jnp
from jax.experimental import pallas as pl
from jax.experimental.pallas import tpu as pltpu


def _round_up(x, m):
    return ((x + m - 1) // m) * m


def _dueling_kernel(x_ref, w1_ref, b1_ref, w2_ref, b2_ref, wh_ref, bh_ref,
                    v_ref, a_ref, *, n_atoms, n_adv):
    # Cast the f32 state tile to bf16 in-kernel (VPU, free in the mem-bound
    # regime); matmuls run on the MXU with f32 accumulation; bias-add + ReLU in
    # f32 on the VPU (v5e has no bf16 VPU), downcast only for the next matmul.
    x = x_ref[...].astype(jnp.bfloat16)
    l1 = jnp.dot(x, w1_ref[...], preferred_element_type=jnp.float32)
    l1 = jnp.maximum(l1 + b1_ref[...], 0.0).astype(jnp.bfloat16)
    l2 = jnp.dot(l1, w2_ref[...], preferred_element_type=jnp.float32)
    l2 = jnp.maximum(l2 + b2_ref[...], 0.0).astype(jnp.bfloat16)
    # Fused V|A head: one lane-padded matmul in VMEM, then slice the true-width
    # V and A segments and store them directly (no padded slab leaves VMEM).
    head = (jnp.dot(l2, wh_ref[...], preferred_element_type=jnp.float32)
            + bh_ref[...])
    v_ref[...] = head[:, :n_atoms].astype(v_ref.dtype)
    a_ref[...] = head[:, n_atoms:n_atoms + n_adv].astype(a_ref.dtype)


def init_params(key, input_dims, fc1_dims, fc2_dims, n_actions, n_atoms):
    """Deterministic init mimicking nn.Linear's U(-1/sqrt(fan_in), 1/sqrt(fan_in))."""
    def linear(k, out_f, in_f):
        kw, kb = jax.random.split(k)
        bound = 1.0 / jnp.sqrt(jnp.float32(in_f))
        w = jax.random.uniform(kw, (out_f, in_f), jnp.float32, -bound, bound)
        b = jax.random.uniform(kb, (out_f,), jnp.float32, -bound, bound)
        return w, b

    k1, k2, k3, k4 = jax.random.split(key, 4)
    fc1_w, fc1_b = linear(k1, fc1_dims, input_dims)
    fc2_w, fc2_b = linear(k2, fc2_dims, fc1_dims)
    V_w, V_b = linear(k3, 1 * n_atoms, fc2_dims)
    A_w, A_b = linear(k4, n_actions * n_atoms, fc2_dims)
    return dict(fc1_w=fc1_w, fc1_b=fc1_b, fc2_w=fc2_w, fc2_b=fc2_b,
                V_w=V_w, V_b=V_b, A_w=A_w, A_b=A_b)


def prepare_params(params, n_actions, n_atoms):
    """One-time prep: transpose (out,in)->(in,out), fuse V|A head, zero-pad the
    HIDDEN dims (fc1/fc2/head) to multiples of 128, cast matmul weights to bf16.
    The input feature (contracting) dim of fc1 is kept at its true width."""
    input_dims = params["fc1_w"].shape[1]
    fc1_dims = params["fc1_w"].shape[0]
    fc2_dims = params["fc2_w"].shape[0]
    n_head = (1 + n_actions) * n_atoms          # V (n_atoms) then A (n_actions*n_atoms)

    fc1_pad = _round_up(fc1_dims, 128)
    fc2_pad = _round_up(fc2_dims, 128)
    head_pad = _round_up(n_head, 128)

    def pad2(w, rows, cols):
        return jnp.pad(w, ((0, rows - w.shape[0]), (0, cols - w.shape[1])))

    w1 = pad2(params["fc1_w"].T, input_dims, fc1_pad).astype(jnp.bfloat16)
    b1 = jnp.pad(params["fc1_b"], (0, fc1_pad - fc1_dims)).reshape(1, -1).astype(jnp.float32)
    w2 = pad2(params["fc2_w"].T, fc1_pad, fc2_pad).astype(jnp.bfloat16)
    b2 = jnp.pad(params["fc2_b"], (0, fc2_pad - fc2_dims)).reshape(1, -1).astype(jnp.float32)

    wh = jnp.concatenate([params["V_w"], params["A_w"]], axis=0).T   # (fc2, n_head)
    wh = pad2(wh, fc2_pad, head_pad).astype(jnp.bfloat16)
    bh = jnp.concatenate([params["V_b"], params["A_b"]], axis=0)
    bh = jnp.pad(bh, (0, head_pad - n_head)).reshape(1, -1).astype(jnp.float32)

    return dict(w1=w1, b1=b1, w2=w2, b2=b2, wh=wh, bh=bh,
                input_dims=input_dims, fc1_pad=fc1_pad, fc2_pad=fc2_pad,
                head_pad=head_pad, n_atoms=n_atoms, n_actions=n_actions)


def dueling_categorical_forward(state, packed, *, max_batch_tile=1024,
                                out_dtype=jnp.bfloat16):
    """state: (B, input_dims) float32. packed: output of prepare_params().
    Returns (V, A) with shapes (B, n_atoms) and (B, n_actions*n_atoms)."""
    B, D = state.shape
    assert D == packed["input_dims"], "state feature dim mismatch"
    fc1_pad = packed["fc1_pad"]
    fc2_pad = packed["fc2_pad"]
    head_pad = packed["head_pad"]
    n_atoms = packed["n_atoms"]
    n_adv = packed["n_actions"] * n_atoms

    # Batch tile derived from B: at least 2 tiles whenever B >= 16 so the
    # "parallel" batch axis can shard across v7x's two TensorCores; tiles capped
    # at max_batch_tile, rounded up to the f32 sublane granularity (8).
    min_tiles = 2 if B >= 16 else 1
    num_tiles = max(pl.cdiv(B, max_batch_tile), min_tiles)
    TB = _round_up(pl.cdiv(B, num_tiles), 8)
    grid = (pl.cdiv(B, TB),)   # last block may be partial; OOB rows are dropped

    batch_map = lambda i: (i, 0)
    const_map = lambda i: (0, 0)   # weights: same block every step -> VMEM-resident

    in_specs = [
        pl.BlockSpec((TB, D), batch_map),          # state, true feature width
        pl.BlockSpec((D, fc1_pad), const_map),
        pl.BlockSpec((1, fc1_pad), const_map),
        pl.BlockSpec((fc1_pad, fc2_pad), const_map),
        pl.BlockSpec((1, fc2_pad), const_map),
        pl.BlockSpec((fc2_pad, head_pad), const_map),
        pl.BlockSpec((1, head_pad), const_map),
    ]
    out_specs = (
        pl.BlockSpec((TB, n_atoms), batch_map),
        pl.BlockSpec((TB, n_adv), batch_map),
    )
    out_shape = (
        jax.ShapeDtypeStruct((B, n_atoms), out_dtype),
        jax.ShapeDtypeStruct((B, n_adv), out_dtype),
    )

    out_bytes = jnp.dtype(out_dtype).itemsize
    in_bytes = jnp.dtype(state.dtype).itemsize
    weight_bytes = (D * fc1_pad + fc1_pad * fc2_pad + fc2_pad * head_pad) * 2
    bias_bytes = (fc1_pad + fc2_pad + head_pad) * 4
    flops = 2 * B * (D * fc1_pad + fc1_pad * fc2_pad + fc2_pad * head_pad)
    bytes_accessed = (B * D * in_bytes + B * (n_atoms + n_adv) * out_bytes
                      + weight_bytes + bias_bytes)

    # VMEM: double-buffered state/output tiles + resident weights + live
    # hidden activations (f32 + bf16) + f32 head accumulator; 2x headroom,
    # capped at 32 MiB (safe on v7x's 64 MiB physical VMEM).
    vmem_need = (2 * TB * D * in_bytes
                 + 2 * TB * (n_atoms + n_adv) * out_bytes
                 + weight_bytes + bias_bytes
                 + TB * (fc1_pad + fc2_pad) * (4 + 2)
                 + TB * head_pad * 4)
    vmem_limit = int(min(max(2 * vmem_need, 8 << 20), 32 << 20))

    kernel = functools.partial(_dueling_kernel, n_atoms=n_atoms, n_adv=n_adv)
    V, A = pl.pallas_call(
        kernel,
        out_shape=out_shape,
        grid=grid,
        in_specs=in_specs,
        out_specs=out_specs,
        compiler_params=pltpu.CompilerParams(
            dimension_semantics=("parallel",),
            vmem_limit_bytes=vmem_limit),
        cost_estimate=pl.CostEstimate(
            flops=flops, transcendentals=0, bytes_accessed=bytes_accessed),
    )(state, packed["w1"], packed["b1"], packed["w2"], packed["b2"],
      packed["wh"], packed["bh"])
    return V, A


def reference_forward_f32(state, params):
    l1 = jnp.maximum(state @ params["fc1_w"].T + params["fc1_b"], 0.0)
    l2 = jnp.maximum(l1 @ params["fc2_w"].T + params["fc2_b"], 0.0)
    V = l2 @ params["V_w"].T + params["V_b"]
    A = l2 @ params["A_w"].T + params["A_b"]
    return V, A


def reference_forward_matched(state, params, out_dtype=jnp.bfloat16):
    """Same math with the kernel's precision (bf16 operands, f32 accumulation,
    outputs rounded to out_dtype)."""
    bf = lambda v: v.astype(jnp.bfloat16)
    l1 = jnp.dot(bf(state), bf(params["fc1_w"].T),
                 preferred_element_type=jnp.float32) + params["fc1_b"]
    l1 = jnp.maximum(l1, 0.0)
    l2 = jnp.dot(bf(l1), bf(params["fc2_w"].T),
                 preferred_element_type=jnp.float32) + params["fc2_b"]
    l2 = jnp.maximum(l2, 0.0)
    V = jnp.dot(bf(l2), bf(params["V_w"].T),
                preferred_element_type=jnp.float32) + params["V_b"]
    A = jnp.dot(bf(l2), bf(params["A_w"].T),
                preferred_element_type=jnp.float32) + params["A_b"]
    return V.astype(out_dtype), A.astype(out_dtype)


def _check(V, A, state, params, batch, n_actions, n_atoms):
    assert V.shape == (batch, n_atoms)
    assert A.shape == (batch, n_actions * n_atoms)
    V32 = V.astype(jnp.float32)
    A32 = A.astype(jnp.float32)
    # Tight check against a precision-matched (bf16-operand, bf16-output) reference.
    V_m, A_m = reference_forward_matched(state, params)
    assert jnp.allclose(V32, V_m.astype(jnp.float32), atol=1e-2, rtol=1e-2), \
        float(jnp.max(jnp.abs(V32 - V_m.astype(jnp.float32))))
    assert jnp.allclose(A32, A_m.astype(jnp.float32), atol=1e-2, rtol=1e-2), \
        float(jnp.max(jnp.abs(A32 - A_m.astype(jnp.float32))))
    # Loose check against the pure-f32 reference (bf16 quantization).
    V_f, A_f = reference_forward_f32(state, params)
    assert jnp.allclose(V32, V_f, atol=6e-2, rtol=6e-2)
    assert jnp.allclose(A32, A_f, atol=6e-2, rtol=6e-2)


if __name__ == "__main__":
    # Small, forward-consistent shapes.
    input_dims = 32
    fc1_dims = 64
    fc2_dims = 32
    n_actions = 4
    n_atoms = 8

    key = jax.random.PRNGKey(0)
    kx, kp, kx2 = jax.random.split(key, 3)
    params = init_params(kp, input_dims, fc1_dims, fc2_dims, n_actions, n_atoms)
    packed = prepare_params(params, n_actions, n_atoms)

    # Case 1: tiny batch, single grid step.
    batch = 8
    state = jax.random.normal(kx, (batch, input_dims), jnp.float32)
    V, A = dueling_categorical_forward(state, packed)
    V = jax.block_until_ready(V)
    A = jax.block_until_ready(A)
    _check(V, A, state, params, batch, n_actions, n_atoms)

    # Case 2: ragged batch -> 2 grid steps with a partial last block
    # (exercises the multi-tile + masked-writeback path used on v7x).
    batch2 = 40
    state2 = jax.random.normal(kx2, (batch2, input_dims), jnp.float32)
    V2, A2 = dueling_categorical_forward(state2, packed)
    V2 = jax.block_until_ready(V2)
    A2 = jax.block_until_ready(A2)
    _check(V2, A2, state2, params, batch2, n_actions, n_atoms)

    print("KERNEL_OK")
</pallas_src>

<mosaic_0001>
module attributes {stable_mosaic.version = 11 : i64} {
  func.func @_dueling_kernel(%arg0: i32, %arg1: memref<8x32xf32, #tpu.memory_space<vmem>>, %arg2: memref<32x128xbf16, #tpu.memory_space<vmem>>, %arg3: memref<1x128xf32, #tpu.memory_space<vmem>>, %arg4: memref<128x128xbf16, #tpu.memory_space<vmem>>, %arg5: memref<1x128xf32, #tpu.memory_space<vmem>>, %arg6: memref<128x128xbf16, #tpu.memory_space<vmem>>, %arg7: memref<1x128xf32, #tpu.memory_space<vmem>>, %arg8: memref<8x8xbf16, #tpu.memory_space<vmem>>, %arg9: memref<8x32xbf16, #tpu.memory_space<vmem>>) attributes {dimension_semantics = [#tpu.dimension_semantics<parallel>], iteration_bounds = array<i64: 1>, scalar_prefetch = 0 : i64, scratch_operands = 0 : i64, tpu.core_type = #tpu.core_type<tc>, window_params = [{transform_indices = @transform_0, window_bounds = array<i64: 8, 32>}, {pipeline_mode = #tpu.pipeline_mode<synchronous>, transform_indices = @transform_1, window_bounds = array<i64: 32, 128>}, {pipeline_mode = #tpu.pipeline_mode<synchronous>, transform_indices = @transform_2, window_bounds = array<i64: 1, 128>}, {pipeline_mode = #tpu.pipeline_mode<synchronous>, transform_indices = @transform_3, window_bounds = array<i64: 128, 128>}, {pipeline_mode = #tpu.pipeline_mode<synchronous>, transform_indices = @transform_4, window_bounds = array<i64: 1, 128>}, {pipeline_mode = #tpu.pipeline_mode<synchronous>, transform_indices = @transform_5, window_bounds = array<i64: 128, 128>}, {pipeline_mode = #tpu.pipeline_mode<synchronous>, transform_indices = @transform_6, window_bounds = array<i64: 1, 128>}, {transform_indices = @transform_7, window_bounds = array<i64: 8, 8>}, {transform_indices = @transform_8, window_bounds = array<i64: 8, 32>}]} {
    %c0 = arith.constant 0 : index
    %c0_0 = arith.constant 0 : index
    %0 = vector.load %arg1[%c0, %c0_0] : memref<8x32xf32, #tpu.memory_space<vmem>>, vector<8x32xf32>
    %1 = arith.truncf %0 : vector<8x32xf32> to vector<8x32xbf16>
    %c0_1 = arith.constant 0 : index
    %c0_2 = arith.constant 0 : index
    %2 = vector.load %arg2[%c0_1, %c0_2] : memref<32x128xbf16, #tpu.memory_space<vmem>>, vector<32x128xbf16>
    %cst = arith.constant dense<0.000000e+00> : vector<8x128xf32>
    %3 = tpu.matmul %1, %2, %cst {dimension_numbers = #tpu.dot_dimension_numbers<[1], [0], [0], [1], [0, 0, 1, 1], [], []>} : vector<8x32xbf16>, vector<32x128xbf16>, vector<8x128xf32> -> vector<8x128xf32>
    %c0_3 = arith.constant 0 : index
    %c0_4 = arith.constant 0 : index
    %4 = vector.load %arg3[%c0_3, %c0_4] : memref<1x128xf32, #tpu.memory_space<vmem>>, vector<1x128xf32>
    %5 = vector.broadcast %4 : vector<1x128xf32> to vector<8x128xf32>
    %6 = arith.addf %3, %5 : vector<8x128xf32>
    %cst_5 = arith.constant 0.000000e+00 : f32
    %7 = vector.broadcast %cst_5 : f32 to vector<8x128xf32>
    %8 = arith.maximumf %6, %7 : vector<8x128xf32>
    %9 = arith.truncf %8 : vector<8x128xf32> to vector<8x128xbf16>
    %c0_6 = arith.constant 0 : index
    %c0_7 = arith.constant 0 : index
    %10 = vector.load %arg4[%c0_6, %c0_7] : memref<128x128xbf16, #tpu.memory_space<vmem>>, vector<128x128xbf16>
    %cst_8 = arith.constant dense<0.000000e+00> : vector<8x128xf32>
    %11 = tpu.matmul %9, %10, %cst_8 {dimension_numbers = #tpu.dot_dimension_numbers<[1], [0], [0], [1], [0, 0, 1, 1], [], []>} : vector<8x128xbf16>, vector<128x128xbf16>, vector<8x128xf32> -> vector<8x128xf32>
    %c0_9 = arith.constant 0 : index
    %c0_10 = arith.constant 0 : index
    %12 = vector.load %arg5[%c0_9, %c0_10] : memref<1x128xf32, #tpu.memory_space<vmem>>, vector<1x128xf32>
    %13 = vector.broadcast %12 : vector<1x128xf32> to vector<8x128xf32>
    %14 = arith.addf %11, %13 : vector<8x128xf32>
    %cst_11 = arith.constant 0.000000e+00 : f32
    %15 = vector.broadcast %cst_11 : f32 to vector<8x128xf32>
    %16 = arith.maximumf %14, %15 : vector<8x128xf32>
    %17 = arith.truncf %16 : vector<8x128xf32> to vector<8x128xbf16>
    %c0_12 = arith.constant 0 : index
    %c0_13 = arith.constant 0 : index
    %18 = vector.load %arg6[%c0_12, %c0_13] : memref<128x128xbf16, #tpu.memory_space<vmem>>, vector<128x128xbf16>
    %cst_14 = arith.constant dense<0.000000e+00> : vector<8x128xf32>
    %19 = tpu.matmul %17, %18, %cst_14 {dimension_numbers = #tpu.dot_dimension_numbers<[1], [0], [0], [1], [0, 0, 1, 1], [], []>} : vector<8x128xbf16>, vector<128x128xbf16>, vector<8x128xf32> -> vector<8x128xf32>
    %c0_15 = arith.constant 0 : index
    %c0_16 = arith.constant 0 : index
    %20 = vector.load %arg7[%c0_15, %c0_16] : memref<1x128xf32, #tpu.memory_space<vmem>>, vector<1x128xf32>
    %21 = vector.broadcast %20 : vector<1x128xf32> to vector<8x128xf32>
    %22 = arith.addf %19, %21 : vector<8x128xf32>
    %23 = vector.extract_strided_slice %22 {offsets = [0, 0], sizes = [8, 8], strides = [1, 1]} : vector<8x128xf32> to vector<8x8xf32>
    %24 = arith.truncf %23 : vector<8x8xf32> to vector<8x8xbf16>
    %c0_17 = arith.constant 0 : index
    %c0_18 = arith.constant 0 : index
    %25 = vector.load %arg8[%c0_17, %c0_18] : memref<8x8xbf16, #tpu.memory_space<vmem>>, vector<8x8xbf16>
    tpu.vector_store %arg8[%c0_17, %c0_18], %24 {strides = array<i32>} : memref<8x8xbf16, #tpu.memory_space<vmem>>, vector<8x8xbf16>,
    %26 = vector.extract_strided_slice %22 {offsets = [0, 8], sizes = [8, 32], strides = [1, 1]} : vector<8x128xf32> to vector<8x32xf32>
    %27 = arith.truncf %26 : vector<8x32xf32> to vector<8x32xbf16>
    %c0_19 = arith.constant 0 : index
    %c0_20 = arith.constant 0 : index
    %28 = vector.load %arg9[%c0_19, %c0_20] : memref<8x32xbf16, #tpu.memory_space<vmem>>, vector<8x32xbf16>
    tpu.vector_store %arg9[%c0_19, %c0_20], %27 {strides = array<i32>} : memref<8x32xbf16, #tpu.memory_space<vmem>>, vector<8x32xbf16>,
    return
  }
  func.func @transform_0(%arg0: i32) -> (i32, i32) {
    %c0_i32 = arith.constant 0 : i32
    %c0_i32_0 = arith.constant 0 : i32
    return %arg0, %c0_i32 : i32, i32
  }
  func.func @transform_1(%arg0: i32) -> (i32, i32) {
    %c0_i32 = arith.constant 0 : i32
    %c0_i32_0 = arith.constant 0 : i32
    %c0_i32_1 = arith.constant 0 : i32
    return %c0_i32, %c0_i32_0 : i32, i32
  }
  func.func @transform_2(%arg0: i32) -> (i32, i32) {
    %c0_i32 = arith.constant 0 : i32
    %c0_i32_0 = arith.constant 0 : i32
    %c0_i32_1 = arith.constant 0 : i32
    return %c0_i32, %c0_i32_0 : i32, i32
  }
  func.func @transform_3(%arg0: i32) -> (i32, i32) {
    %c0_i32 = arith.constant 0 : i32
    %c0_i32_0 = arith.constant 0 : i32
    %c0_i32_1 = arith.constant 0 : i32
    return %c0_i32, %c0_i32_0 : i32, i32
  }
  func.func @transform_4(%arg0: i32) -> (i32, i32) {
    %c0_i32 = arith.constant 0 : i32
    %c0_i32_0 = arith.constant 0 : i32
    %c0_i32_1 = arith.constant 0 : i32
    return %c0_i32, %c0_i32_0 : i32, i32
  }
  func.func @transform_5(%arg0: i32) -> (i32, i32) {
    %c0_i32 = arith.constant 0 : i32
    %c0_i32_0 = arith.constant 0 : i32
    %c0_i32_1 = arith.constant 0 : i32
    return %c0_i32, %c0_i32_0 : i32, i32
  }
  func.func @transform_6(%arg0: i32) -> (i32, i32) {
    %c0_i32 = arith.constant 0 : i32
    %c0_i32_0 = arith.constant 0 : i32
    %c0_i32_1 = arith.constant 0 : i32
    return %c0_i32, %c0_i32_0 : i32, i32
  }
  func.func @transform_7(%arg0: i32) -> (i32, i32) {
    %c0_i32 = arith.constant 0 : i32
    %c0_i32_0 = arith.constant 0 : i32
    return %arg0, %c0_i32 : i32, i32
  }
  func.func @transform_8(%arg0: i32) -> (i32, i32) {
    %c0_i32 = arith.constant 0 : i32
    %c0_i32_0 = arith.constant 0 : i32
    return %arg0, %c0_i32 : i32, i32
  }
}

</mosaic_0001>

<llo_original>
// kernel: tpu_custom_call.1
$region0: #{tpu_custom_call.1}
  #allocation0 [shape = 'u32[]', space=smem, size = 0x4, offset = 0x4, fixed_abs, tag = 'smem constant byte address 0x4 - core index']
  #allocation1 [shape = 'u32[144,128]{1,0:T(1,128)}', space=vmem, size = 0x12000, scoped, tag = 'internal scratch']
  %s0 = inlined_call_operand.hbm [shape: f32[8,32], index: 0, kind: input, shape index: {}]
  %s1 = inlined_call_operand.hbm [shape: bf16[32,128], index: 1, kind: input, shape index: {}]
  %s2 = inlined_call_operand.vmem [shape: f32[1,128], index: 2, kind: input, shape index: {}]
  %s3 = inlined_call_operand.hbm [shape: bf16[128,128], index: 3, kind: input, shape index: {}]
  %s4 = inlined_call_operand.vmem [shape: f32[1,128], index: 4, kind: input, shape index: {}]
  %s5 = inlined_call_operand.hbm [shape: bf16[128,128], index: 5, kind: input, shape index: {}]
  %s6 = inlined_call_operand.vmem [shape: f32[1,128], index: 6, kind: input, shape index: {}]
  %s7 = inlined_call_operand.hbm [shape: bf16[8,8], index: 7, kind: output, shape index: {0}]
  %s8 = inlined_call_operand.hbm [shape: bf16[8,32], index: 8, kind: output, shape index: {1}]
  %9 = xla_tuple %s7, %s8
  %s10 = sld [smem:[#allocation0]]
  $region62: #{tpu_custom_call.1} parent=0
    _
  %s12 = ssub.s32 1, %s10
  %s13 = scalar_select 0, %s12, %s10
  $region1: #{tpu_custom_call.1} parent=0
    #allocation2 [shape = 'u8[4096]{0}', space=vmem, size = 0x1000, scoped, tag = 'input window, operand 0, single buffered']
    #allocation3 [shape = 's32[1]{0}', space=sflag, size = 0x4, scoped, tag = 'scoped memory for tpu_custom_call.1']
    #allocation4 [shape = 's32[1]{0}', space=sflag, size = 0x4, scoped, tag = 'scoped memory for tpu_custom_call.1']
    #allocation5 [shape = 'u8[8192]{0}', space=vmem, size = 0x2000, scoped, tag = 'input window, operand 1, single buffered']
    #allocation6 [shape = 's32[1]{0}', space=sflag, size = 0x4, scoped, tag = 'scoped memory for tpu_custom_call.1']
    #allocation7 [shape = 'u8[32768]{0}', space=vmem, size = 0x8000, scoped, tag = 'input window, operand 3, single buffered']
    #allocation8 [shape = 'u8[32768]{0}', space=vmem, size = 0x8000, scoped, tag = 'input window, operand 5, single buffered']
    #allocation9 [shape = 's32[1]{0}', space=sflag, size = 0x4, scoped, tag = 'scoped memory for tpu_custom_call.1']
    #allocation10 [shape = 'u8[2048]{0}', space=vmem, size = 0x800, scoped, tag = 'output window, operand 0, single buffered']
    #allocation11 [shape = 'u8[2048]{0}', space=vmem, size = 0x800, scoped, tag = 'output window, operand 1, single buffered']
    #allocation12 [shape = 's32[1]{0}', space=sflag, size = 0x4, scoped, tag = 'scoped memory for tpu_custom_call.1']
    %14 = vsyncpa [#allocation3], 0
    %15 = vsyncpa [#allocation6], 0
    %16 = vsyncpa [#allocation9], 0
    %17 = vsyncpa [#allocation4], 0
    %18 = vsyncpa [#allocation12], 0
    // Predicated region
    $region2: #{tpu_custom_call.1} parent=1 // pred_check
      _
    $region3: #{tpu_custom_call.1} parent=1 // pred_check_branch
      %20 = sbr.rel (0) target = $region5
    $region4: #{tpu_custom_call.1} parent=1 // pred_region
      %s22 = ssub.s32 128, 128
      %23 = vsyncadd [#allocation3], %s22
      %s25 = sshll.u32 [#allocation2], 4
      %s26 = int_to_ptr.vmem [resolvable:$true] %s25
      %28 = dma.hbm_to_vmem [thread:$0]  %s0, 128, %s26, [#allocation3]
    $region5: #{tpu_custom_call.1} parent=1 // pred_fallthru
      _
    // Predicated region
    $region6: #{tpu_custom_call.1} parent=1 // pred_check
      _
    $region7: #{tpu_custom_call.1} parent=1 // pred_check_branch
      %30 = sbr.rel (0) target = $region9
    $region8: #{tpu_custom_call.1} parent=1 // pred_region
      %s32 = ssub.s32 256, 256
      %33 = vsyncadd [#allocation6], %s32
      %s34 = sshll.u32 [#allocation5], 4
      %s35 = int_to_ptr.vmem [resolvable:$true] %s34
      %40 = dma.hbm_to_vmem [thread:$0]  %s1, 256, %s35, [#allocation6], 64, 64, 4
    $region9: #{tpu_custom_call.1} parent=1 // pred_fallthru
      _
    // Predicated region
    $region10: #{tpu_custom_call.1} parent=1 // pred_check
      _
    $region11: #{tpu_custom_call.1} parent=1 // pred_check_branch
      %42 = sbr.rel (0) target = $region13
    $region12: #{tpu_custom_call.1} parent=1 // pred_region
      _
    $region13: #{tpu_custom_call.1} parent=1 // pred_fallthru
      _
    // Predicated region
    $region14: #{tpu_custom_call.1} parent=1 // pred_check
      _
    $region15: #{tpu_custom_call.1} parent=1 // pred_check_branch
      %44 = sbr.rel (0) target = $region17
    $region16: #{tpu_custom_call.1} parent=1 // pred_region
      %s46 = ssub.s32 1024, 1024
      %47 = vsyncadd [#allocation6], %s46
      %s48 = sshll.u32 [#allocation7], 4
      %s49 = int_to_ptr.vmem [resolvable:$true] %s48
      %54 = dma.hbm_to_vmem [thread:$0]  %s3, 1024, %s49, [#allocation6], 64, 64, 4
    $region17: #{tpu_custom_call.1} parent=1 // pred_fallthru
      _
    // Predicated region
    $region18: #{tpu_custom_call.1} parent=1 // pred_check
      _
    $region19: #{tpu_custom_call.1} parent=1 // pred_check_branch
      %56 = sbr.rel (0) target = $region21
    $region20: #{tpu_custom_call.1} parent=1 // pred_region
      _
    $region21: #{tpu_custom_call.1} parent=1 // pred_fallthru
      _
    // Predicated region
    $region22: #{tpu_custom_call.1} parent=1 // pred_check
      _
    $region23: #{tpu_custom_call.1} parent=1 // pred_check_branch
      %58 = sbr.rel (0) target = $region25
    $region24: #{tpu_custom_call.1} parent=1 // pred_region
      %s60 = ssub.s32 1024, 1024
      %61 = vsyncadd [#allocation9], %s60
      %s62 = sshll.u32 [#allocation8], 4
      %s63 = int_to_ptr.vmem [resolvable:$true] %s62
      %68 = dma.hbm_to_vmem [thread:$0]  %s5, 1024, %s63, [#allocation9], 64, 64, 4
    $region25: #{tpu_custom_call.1} parent=1 // pred_fallthru
      _
    // Predicated region
    $region26: #{tpu_custom_call.1} parent=1 // pred_check
      _
    $region27: #{tpu_custom_call.1} parent=1 // pred_check_branch
      %70 = sbr.rel (0) target = $region29
    $region28: #{tpu_custom_call.1} parent=1 // pred_region
      _
    $region29: #{tpu_custom_call.1} parent=1 // pred_fallthru
      _
    // Predicated region
    $region30: #{tpu_custom_call.1} parent=1 // pred_check
      _
    $region31: #{tpu_custom_call.1} parent=1 // pred_check_branch
      %72 = sbr.rel (0) target = $region33
    $region32: #{tpu_custom_call.1} parent=1 // pred_region
      %73 = dma.done [#allocation3], 128
    $region33: #{tpu_custom_call.1} parent=1 // pred_fallthru
      _
    // Predicated region
    $region34: #{tpu_custom_call.1} parent=1 // pred_check
      _
    $region35: #{tpu_custom_call.1} parent=1 // pred_check_branch
      %75 = sbr.rel (0) target = $region37
    $region36: #{tpu_custom_call.1} parent=1 // pred_region
      %76 = dma.done [#allocation6], 256
    $region37: #{tpu_custom_call.1} parent=1 // pred_fallthru
      _
    // Predicated region
    $region38: #{tpu_custom_call.1} parent=1 // pred_check
      _
    $region39: #{tpu_custom_call.1} parent=1 // pred_check_branch
      %78 = sbr.rel (0) target = $region41
    $region40: #{tpu_custom_call.1} parent=1 // pred_region
      %79 = dma.done [#allocation6], 1024
    $region41: #{tpu_custom_call.1} parent=1 // pred_fallthru
      _
    // Predicated region
    $region42: #{tpu_custom_call.1} parent=1 // pred_check
      _
    $region43: #{tpu_custom_call.1} parent=1 // pred_check_branch
      %81 = sbr.rel (0) target = $region45
    $region44: #{tpu_custom_call.1} parent=1 // pred_region
      %82 = dma.done [#allocation9], 1024
    $region45: #{tpu_custom_call.1} parent=1 // pred_fallthru
      _
    %v84 = vld [vmem:[#allocation2] sm:$0xff]
    %v85 = vpack.c.bf16 %v84, %v84
    %v86 = vld [vmem:[#allocation5] sm:$0xf]
    %v87 = vld [vmem:[#allocation5 + $0x4] sm:$0xf]
    %v88 = vld [vmem:[#allocation5 + $0x8] sm:$0xf]
    %v89 = vld [vmem:[#allocation5 + $0xc] sm:$0xf]
    %v90 = vld [vmem:[%s2] sm:$0x1]
    %v92 = vlaneseq
    %v93 = vshrl.u32 %v92, 7
    %v94 = vsub.s32 0, %v93
    %v95 = vrot.slane %v90, %v94
    %v101 = vunpack.c.l.b16 %v86
    %v102 = vunpack.c.l.b16 %v87
    %v103 = vunpack.c.l.b16 %v88
    %v104 = vunpack.c.l.b16 %v89
    %v105 = vpack.c.b16 %v102, %v101
    %v106 = vpack.c.b16 %v104, %v103
    %vm109 = vcmask 261120
    %v111 = vsel %vm109, %v85, 0
    %113 = vmatprep.subr.bf16.mxu0 0
    %114 = vmatpush1.bf16.msra.mxu0 %v105
    %115 = vmatprep.subr.bf16.mxu0 0
    %116 = vmatpush1.bf16.msra.mxu0 %v106
    %117 = vmatprep.subr.bf16.mxu0 0
    %118 = vmatpush1.bf16.msra.mxu0 0
    %119 = vmatprep.subr.bf16.mxu0 0
    %120 = vmatpush1.bf16.msra.mxu0 0
    %121 = vmatprep.subr.bf16.mxu0 0
    %122 = vmatpush1.bf16.msra.mxu0 0
    %123 = vmatprep.subr.bf16.mxu0 0
    %124 = vmatpush1.bf16.msra.mxu0 0
    %125 = vmatprep.subr.bf16.mxu0 0
    %126 = vmatpush1.bf16.msra.mxu0 0
    %127 = vmatprep.subr.bf16.mxu0 0
    %128 = vmatpush1.bf16.msra.mxu0 0
    %129 = vmatprep.subr.bf16.mxu0 0
    %130 = vmatpush1.bf16.msra.mxu0 0
    %131 = vmatprep.subr.bf16.mxu0 0
    %132 = vmatpush1.bf16.msra.mxu0 0
    %133 = vmatprep.subr.bf16.mxu0 0
    %134 = vmatpush1.bf16.msra.mxu0 0
    %135 = vmatprep.subr.bf16.mxu0 0
    %136 = vmatpush1.bf16.msra.mxu0 0
    %137 = vmatprep.subr.bf16.mxu0 0
    %138 = vmatpush1.bf16.msra.mxu0 0
    %139 = vmatprep.subr.bf16.mxu0 0
    %140 = vmatpush1.bf16.msra.mxu0 0
    %141 = vmatprep.subr.bf16.mxu0 0
    %142 = vmatpush1.bf16.msra.mxu0 0
    %143 = vmatprep.subr.bf16.mxu0 0
    %144 = vmatpush1.bf16.msra.mxu0 0
    %145 = vmatprep.mubr.bf16.mxu0 0
    %146 = vmatmul.mubr.bf16.gmra.mrb[0].mxu0 %v111
    %v147 = vpop.f32.mrb[0].mxu0
    %v148 = vadd.f32 %v95, %v147
    %v149 = vpop.f32.mrb[0].mxu0
    %v150 = vpop.f32.mrb[0].mxu0
    %v151 = vpop.f32.mrb[0].mxu0
    %152 = vdwg.mxu0
    %v153 = vmax.f32 %v148, 0.0
    %v154 = vpack.c.bf16 %v153, %v153
    %v155 = vld [vmem:[#allocation7] sm:$0xf]
    %v156 = vld [vmem:[#allocation7 + $0x4] sm:$0xf]
    %v157 = vld [vmem:[#allocation7 + $0x8] sm:$0xf]
    %v158 = vld [vmem:[#allocation7 + $0xc] sm:$0xf]
    %v159 = vld [vmem:[#allocation7 + $0x10] sm:$0xf]
    %v160 = vld [vmem:[#allocation7 + $0x14] sm:$0xf]
    %v161 = vld [vmem:[#allocation7 + $0x18] sm:$0xf]
    %v162 = vld [vmem:[#allocation7 + $0x1c] sm:$0xf]
    %v163 = vld [vmem:[#allocation7 + $0x20] sm:$0xf]
    %v164 = vld [vmem:[#allocation7 + $0x24] sm:$0xf]
    %v165 = vld [vmem:[#allocation7 + $0x28] sm:$0xf]
    %v166 = vld [vmem:[#allocation7 + $0x2c] sm:$0xf]
    %v167 = vld [vmem:[#allocation7 + $0x30] sm:$0xf]
    %v168 = vld [vmem:[#allocation7 + $0x34] sm:$0xf]
    %v169 = vld [vmem:[#allocation7 + $0x38] sm:$0xf]
    %v170 = vld [vmem:[#allocation7 + $0x3c] sm:$0xf]
    %v171 = vld [vmem:[%s4] sm:$0x1]
    %v173 = vlaneseq
    %v174 = vshrl.u32 %v173, 7
    %v175 = vsub.s32 0, %v174
    %v176 = vrot.slane %v171, %v175
    %v194 = vunpack.c.l.b16 %v155
    %v195 = vunpack.c.l.b16 %v156
    %v196 = vunpack.c.l.b16 %v157
    %v197 = vunpack.c.l.b16 %v158
    %v198 = vunpack.c.l.b16 %v159
    %v199 = vunpack.c.l.b16 %v160
    %v200 = vunpack.c.l.b16 %v161
    %v201 = vunpack.c.l.b16 %v162
    %v202 = vunpack.c.l.b16 %v163
    %v203 = vunpack.c.l.b16 %v164
    %v204 = vunpack.c.l.b16 %v165
    %v205 = vunpack.c.l.b16 %v166
    %v206 = vunpack.c.l.b16 %v167
    %v207 = vunpack.c.l.b16 %v168
    %v208 = vunpack.c.l.b16 %v169
    %v209 = vunpack.c.l.b16 %v170
    %v210 = vpack.c.b16 %v195, %v194
    %v211 = vpack.c.b16 %v197, %v196
    %v212 = vpack.c.b16 %v199, %v198
    %v213 = vpack.c.b16 %v201, %v200
    %v214 = vpack.c.b16 %v203, %v202
    %v215 = vpack.c.b16 %v205, %v204
    %v216 = vpack.c.b16 %v207, %v206
    %v217 = vpack.c.b16 %v209, %v208
    %226 = vmatprep.subr.bf16.mxu0 0
    %227 = vmatpush1.bf16.msra.mxu0 %v210
    %228 = vmatprep.subr.bf16.mxu0 0
    %229 = vmatpush1.bf16.msra.mxu0 %v211
    %230 = vmatprep.subr.bf16.mxu0 0
    %231 = vmatpush1.bf16.msra.mxu0 %v212
    %232 = vmatprep.subr.bf16.mxu0 0
    %233 = vmatpush1.bf16.msra.mxu0 %v213
    %234 = vmatprep.subr.bf16.mxu0 0
    %235 = vmatpush1.bf16.msra.mxu0 %v214
    %236 = vmatprep.subr.bf16.mxu0 0
    %237 = vmatpush1.bf16.msra.mxu0 %v215
    %238 = vmatprep.subr.bf16.mxu0 0
    %239 = vmatpush1.bf16.msra.mxu0 %v216
    %240 = vmatprep.subr.bf16.mxu0 0
    %241 = vmatpush1.bf16.msra.mxu0 %v217
    %242 = vmatprep.subr.bf16.mxu0 0
    %243 = vmatpush1.bf16.msra.mxu0 0
    %244 = vmatprep.subr.bf16.mxu0 0
    %245 = vmatpush1.bf16.msra.mxu0 0
    %246 = vmatprep.subr.bf16.mxu0 0
    %247 = vmatpush1.bf16.msra.mxu0 0
    %248 = vmatprep.subr.bf16.mxu0 0
    %249 = vmatpush1.bf16.msra.mxu0 0
    %250 = vmatprep.subr.bf16.mxu0 0
    %251 = vmatpush1.bf16.msra.mxu0 0
    %252 = vmatprep.subr.bf16.mxu0 0
    %253 = vmatpush1.bf16.msra.mxu0 0
    %254 = vmatprep.subr.bf16.mxu0 0
    %255 = vmatpush1.bf16.msra.mxu0 0
    %256 = vmatprep.subr.bf16.mxu0 0
    %257 = vmatpush1.bf16.msra.mxu0 0
    %258 = vmatprep.mubr.bf16.mxu0 0
    %259 = vmatmul.mubr.bf16.gmra.mrb[0].mxu0 %v154
    %v260 = vpop.f32.mrb[0].mxu0
    %v261 = vadd.f32 %v176, %v260
    %v262 = vpop.f32.mrb[0].mxu0
    %v263 = vpop.f32.mrb[0].mxu0
    %v264 = vpop.f32.mrb[0].mxu0
    %265 = vdwg.mxu0
    %v266 = vmax.f32 %v261, 0.0
    %v267 = vpack.c.bf16 %v266, %v266
    %v268 = vld [vmem:[#allocation8] sm:$0xf]
    %v269 = vld [vmem:[#allocation8 + $0x4] sm:$0xf]
    %v270 = vld [vmem:[#allocation8 + $0x8] sm:$0xf]
    %v271 = vld [vmem:[#allocation8 + $0xc] sm:$0xf]
    %v272 = vld [vmem:[#allocation8 + $0x10] sm:$0xf]
    %v273 = vld [vmem:[#allocation8 + $0x14] sm:$0xf]
    %v274 = vld [vmem:[#allocation8 + $0x18] sm:$0xf]
    %v275 = vld [vmem:[#allocation8 + $0x1c] sm:$0xf]
    %v276 = vld [vmem:[#allocation8 + $0x20] sm:$0xf]
    %v277 = vld [vmem:[#allocation8 + $0x24] sm:$0xf]
    %v278 = vld [vmem:[#allocation8 + $0x28] sm:$0xf]
    %v279 = vld [vmem:[#allocation8 + $0x2c] sm:$0xf]
    %v280 = vld [vmem:[#allocation8 + $0x30] sm:$0xf]
    %v281 = vld [vmem:[#allocation8 + $0x34] sm:$0xf]
    %v282 = vld [vmem:[#allocation8 + $0x38] sm:$0xf]
    %v283 = vld [vmem:[#allocation8 + $0x3c] sm:$0xf]
    %v284 = vld [vmem:[%s6] sm:$0x1]
    %v286 = vlaneseq
    %v287 = vshrl.u32 %v286, 7
    %v288 = vsub.s32 0, %v287
    %v289 = vrot.slane %v284, %v288
    %v307 = vunpack.c.l.b16 %v268
    %v308 = vunpack.c.l.b16 %v269
    %v309 = vunpack.c.l.b16 %v270
    %v310 = vunpack.c.l.b16 %v271
    %v311 = vunpack.c.l.b16 %v272
    %v312 = vunpack.c.l.b16 %v273
    %v313 = vunpack.c.l.b16 %v274
    %v314 = vunpack.c.l.b16 %v275
    %v315 = vunpack.c.l.b16 %v276
    %v316 = vunpack.c.l.b16 %v277
    %v317 = vunpack.c.l.b16 %v278
    %v318 = vunpack.c.l.b16 %v279
    %v319 = vunpack.c.l.b16 %v280
    %v320 = vunpack.c.l.b16 %v281
    %v321 = vunpack.c.l.b16 %v282
    %v322 = vunpack.c.l.b16 %v283
    %v323 = vpack.c.b16 %v308, %v307
    %v324 = vpack.c.b16 %v310, %v309
    %v325 = vpack.c.b16 %v312, %v311
    %v326 = vpack.c.b16 %v314, %v313
    %v327 = vpack.c.b16 %v316, %v315
    %v328 = vpack.c.b16 %v318, %v317
    %v329 = vpack.c.b16 %v320, %v319
    %v330 = vpack.c.b16 %v322, %v321
    %339 = vmatprep.subr.bf16.mxu0 0
    %340 = vmatpush1.bf16.msra.mxu0 %v323
    %341 = vmatprep.subr.bf16.mxu0 0
    %342 = vmatpush1.bf16.msra.mxu0 %v324
    %343 = vmatprep.subr.bf16.mxu0 0
    %344 = vmatpush1.bf16.msra.mxu0 %v325
    %345 = vmatprep.subr.bf16.mxu0 0
    %346 = vmatpush1.bf16.msra.mxu0 %v326
    %347 = vmatprep.subr.bf16.mxu0 0
    %348 = vmatpush1.bf16.msra.mxu0 %v327
    %349 = vmatprep.subr.bf16.mxu0 0
    %350 = vmatpush1.bf16.msra.mxu0 %v328
    %351 = vmatprep.subr.bf16.mxu0 0
    %352 = vmatpush1.bf16.msra.mxu0 %v329
    %353 = vmatprep.subr.bf16.mxu0 0
    %354 = vmatpush1.bf16.msra.mxu0 %v330
    %355 = vmatprep.subr.bf16.mxu0 0
    %356 = vmatpush1.bf16.msra.mxu0 0
    %357 = vmatprep.subr.bf16.mxu0 0
    %358 = vmatpush1.bf16.msra.mxu0 0
    %359 = vmatprep.subr.bf16.mxu0 0
    %360 = vmatpush1.bf16.msra.mxu0 0
    %361 = vmatprep.subr.bf16.mxu0 0
    %362 = vmatpush1.bf16.msra.mxu0 0
    %363 = vmatprep.subr.bf16.mxu0 0
    %364 = vmatpush1.bf16.msra.mxu0 0
    %365 = vmatprep.subr.bf16.mxu0 0
    %366 = vmatpush1.bf16.msra.mxu0 0
    %367 = vmatprep.subr.bf16.mxu0 0
    %368 = vmatpush1.bf16.msra.mxu0 0
    %369 = vmatprep.subr.bf16.mxu0 0
    %370 = vmatpush1.bf16.msra.mxu0 0
    %371 = vmatprep.mubr.bf16.mxu0 0
    %372 = vmatmul.mubr.bf16.gmra.mrb[0].mxu0 %v267
    %v373 = vpop.f32.mrb[0].mxu0
    %v374 = vadd.f32 %v289, %v373
    %v375 = vpop.f32.mrb[0].mxu0
    %v376 = vpop.f32.mrb[0].mxu0
    %v377 = vpop.f32.mrb[0].mxu0
    %378 = vdwg.mxu0
    %v379 = vpack.c.bf16 %v374, %v374
    %vm380 = vcmask 60416
    %381 = vst.msk [vmem:[#allocation10] sm:$0xf] %vm380, %v379
    %v383 = vunpack.c.l.b16 %v379
    %v384 = vpack.c.b16 %v383, %v383
    %385 = vrot.lane.b32.xlu0 %v384, 120
    %v386 = vpop.permute.xlu0 %385
    %vm388 = vcmask 257024
    %389 = vst.msk [vmem:[#allocation11] sm:$0xf] %vm388, %v386
    // Predicated region
    $region46: #{tpu_custom_call.1} parent=1 // pred_check
      _
    $region47: #{tpu_custom_call.1} parent=1 // pred_check_branch
      %391 = sbr.rel (0) target = $region49
    $region48: #{tpu_custom_call.1} parent=1 // pred_region
      %s393 = ssub.s32 64, 64
      %394 = vsyncadd [#allocation4], %s393
      %s396 = sshll.u32 [#allocation10], 4
      %s397 = int_to_ptr.vmem [resolvable:$true] %s396
      %399 = dma.vmem_to_hbm [thread:$0]  %s397, 64, %s7, [#allocation4]
    $region49: #{tpu_custom_call.1} parent=1 // pred_fallthru
      _
    // Predicated region
    $region50: #{tpu_custom_call.1} parent=1 // pred_check
      _
    $region51: #{tpu_custom_call.1} parent=1 // pred_check_branch
      %401 = sbr.rel (0) target = $region53
    $region52: #{tpu_custom_call.1} parent=1 // pred_region
      %s403 = ssub.s32 64, 64
      %404 = vsyncadd [#allocation12], %s403
      %s406 = sshll.u32 [#allocation11], 4
      %s407 = int_to_ptr.vmem [resolvable:$true] %s406
      %409 = dma.vmem_to_hbm [thread:$0]  %s407, 64, %s8, [#allocation12]
    $region53: #{tpu_custom_call.1} parent=1 // pred_fallthru
      _
    // Predicated region
    $region54: #{tpu_custom_call.1} parent=1 // pred_check
      _
    $region55: #{tpu_custom_call.1} parent=1 // pred_check_branch
      %411 = sbr.rel (0) target = $region57
    $region56: #{tpu_custom_call.1} parent=1 // pred_region
      %412 = dma.done [#allocation4], 64
    $region57: #{tpu_custom_call.1} parent=1 // pred_fallthru
      _
    // Predicated region
    $region58: #{tpu_custom_call.1} parent=1 // pred_check
      _
    $region59: #{tpu_custom_call.1} parent=1 // pred_check_branch
      %414 = sbr.rel (0) target = $region61
    $region60: #{tpu_custom_call.1} parent=1 // pred_region
      %415 = dma.done [#allocation12], 64
    $region61: #{tpu_custom_call.1} parent=1 // pred_fallthru
      _
    %416 = vsyncpa [#allocation3], 1
    %417 = vsyncpa [#allocation6], 1
    %418 = vsyncpa [#allocation9], 1
    %419 = vsyncpa [#allocation4], 1
    %420 = vsyncpa [#allocation12], 1

</llo_original>
